<compile_context>
chip_gen: v5e
topology: v5e:2x2
jax: 0.10.0
libtpu: 0.0.40
codegen_flags: <defaults>
</compile_context>

<pallas_src>
import jax
import jax.numpy as jnp
import numpy as np
from jax.experimental import pallas as pl
from jax.experimental.pallas import tpu as pltpu

CONV_CHANNELS = 32


def _round_up(x, m):
    return ((x + m - 1) // m) * m


def make_pnn_kernel(n_rest):
    """Fused PNN forward kernel for a fixed number of post-fold MLP layers."""

    def kernel(*refs):
        (uidx_ref, iidx_ref, utab_ref, itab_ref,
         r_ref, t_ref, wcomb_ref, bfold_ref) = refs[:8]
        rest = refs[8:8 + 2 * n_rest]
        wout_ref, bout_ref, out_ref = refs[8 + 2 * n_rest:]

        tb = uidx_ref.shape[0]
        nu = utab_ref.shape[0]
        ni = itab_ref.shape[0]

        # --- fused embedding gather: one-hot row-select on the MXU ----------
        # Tables are small and resident in VMEM (bf16 storage, f32 compute).
        # TODO(synk): for very large vocabularies switch to scalar-prefetched
        # row DMA instead of the one-hot matmul gather.
        u_oh = (uidx_ref[...] ==
                jax.lax.broadcasted_iota(jnp.int32, (tb, nu), 1)
                ).astype(jnp.float32)
        i_oh = (iidx_ref[...] ==
                jax.lax.broadcasted_iota(jnp.int32, (tb, ni), 1)
                ).astype(jnp.float32)
        u = jnp.dot(u_oh, utab_ref[...].astype(jnp.float32),
                    preferred_element_type=jnp.float32)              # (tb, D)
        v = jnp.dot(i_oh, itab_ref[...].astype(jnp.float32),
                    preferred_element_type=jnp.float32)              # (tb, D)

        # --- lane-dense outer product (tb, D*D) via constant expansions -----
        ue = jnp.dot(u, r_ref[...], preferred_element_type=jnp.float32)
        ve = jnp.dot(v, t_ref[...], preferred_element_type=jnp.float32)
        outer_flat = ue * ve                                          # (tb, D*D)

        # --- folded [inner-product + conv + first MLP layer] + ReLU ---------
        x = jnp.maximum(
            jnp.dot(outer_flat, wcomb_ref[...],
                    preferred_element_type=jnp.float32) + bfold_ref[...],
            0.0)

        # --- remaining MLP layers -------------------------------------------
        for k in range(n_rest):
            w = rest[2 * k][...]
            b = rest[2 * k + 1][...]
            x = jnp.maximum(
                jnp.dot(x, w, preferred_element_type=jnp.float32) + b, 0.0)

        # --- output head, lane-dense (1, tb) row + exact sigmoid ------------
        y = jax.lax.dot_general(
            wout_ref[...], x, (((1,), (1,)), ((), ())),
            preferred_element_type=jnp.float32) + bout_ref[...]      # (1, tb)
        out_ref[...] = pl.reciprocal(1.0 + jnp.exp(-y), approx=False)

    return kernel


def pnn_forward(user_input, item_input, params, *, batch_tile=4096):
    """Fused Pallas PNN forward pass (batch-tiled grid, fully in-kernel)."""
    D = params["user_emb"].shape[1]
    C = CONV_CHANNELS
    H0 = params["w_ip"].shape[1]
    mlp = params["mlp"]
    n_rest = len(mlp) - 1
    B = int(user_input.shape[0])

    # ---- host-side fold of both interaction branches into the first layer --
    wc_flat = params["w_conv"].reshape(C, D * D).T                 # (D*D, C)
    w1, b1 = mlp[0]
    w1_ip, w1_conv = w1[:H0], w1[H0:]                              # concat order [ip, conv]
    w_comb = wc_flat @ w1_conv                                     # (D*D, H1)
    diag_rows = jnp.arange(D) * (D + 1)                            # index d*D + d
    w_comb = w_comb.at[diag_rows].add(params["w_ip"] @ w1_ip)
    b_fold = params["b_ip"] @ w1_ip + params["b_conv"] @ w1_conv + b1

    # ---- constant 0/1 expansion matrices: u@R / v@T are lane-dense ---------
    eye = jnp.eye(D, dtype=jnp.float32)
    R = jnp.repeat(eye, D, axis=1)       # R[d1, d1*D + d2] = 1
    T = jnp.tile(eye, (1, D))            # T[d2, d1*D + d2] = 1

    # bf16 table storage (halves VMEM/HBM bytes; upcast to f32 in-kernel, so
    # no bf16 elementwise math on v5e's VPU).
    utab = params["user_emb"].astype(jnp.bfloat16)
    itab = params["item_emb"].astype(jnp.bfloat16)

    wout_row = params["w_out"].T                                   # (1, H_last)

    # ---- batch tiling: 8/128-aligned, >=2 grid steps when batch allows -----
    if B <= 256:
        tb = max(8, _round_up(B, 8))                 # single full tile
    else:
        bt = max(128, _round_up(batch_tile, 128))
        tb = min(bt, max(128, _round_up(pl.cdiv(B, 2), 128)))
    num_tiles = pl.cdiv(B, tb)
    total = num_tiles * tb

    pad = total - B
    uidx = jnp.pad(user_input.astype(jnp.int32).reshape(B, 1), ((0, pad), (0, 0)))
    iidx = jnp.pad(item_input.astype(jnp.int32).reshape(B, 1), ((0, pad), (0, 0)))

    kernel_inputs = [uidx, iidx, utab, itab, R, T, w_comb, b_fold]
    for w, b in mlp[1:]:
        kernel_inputs += [w, b]
    kernel_inputs += [wout_row, params["b_out"]]

    # Weights/tables (all 2-D) stay resident across grid steps: block index 0.
    # TODO(synk): mark these single-buffered (pipeline_mode=pl.Buffered(1))
    # once needed — only matters on v7x's 64 MiB VMEM at much larger widths.
    def resident(a):
        return pl.BlockSpec(a.shape, lambda b: (0, 0))

    in_specs = [pl.BlockSpec((tb, 1), lambda b: (b, 0)),
                pl.BlockSpec((tb, 1), lambda b: (b, 0))]
    in_specs += [resident(a) for a in kernel_inputs[2:]]
    out_spec = pl.BlockSpec((1, tb), lambda b: (0, b))

    out = pl.pallas_call(
        make_pnn_kernel(n_rest),
        out_shape=jax.ShapeDtypeStruct((1, total), jnp.float32),
        grid=(num_tiles,),
        in_specs=in_specs,
        out_specs=out_spec,
        compiler_params=pltpu.CompilerParams(
            dimension_semantics=("parallel",),
            vmem_limit_bytes=32 * 1024 * 1024),
    )(*kernel_inputs)

    return out.reshape(-1)[:B].reshape(B, 1)


def init_params(key, num_users, num_items, embedding_dim, mlp_layers):
    D = embedding_dim
    H0 = mlp_layers[0]
    C = CONV_CHANNELS
    n_mlp = len(mlp_layers) - 1
    keys = jax.random.split(key, 8 + 2 * n_mlp + 2)
    kit = iter(range(len(keys)))

    def rnd(shape, scale=0.1):
        return jax.random.normal(keys[next(kit)], shape, jnp.float32) * scale

    params = {
        "user_emb": rnd((num_users, D)),
        "item_emb": rnd((num_items, D)),
        # PyTorch Linear weight is (out, in); stored pre-transposed (in, out).
        "w_ip": rnd((D, H0)),
        "b_ip": rnd((1, H0)),
        "w_conv": rnd((C, D, D)),     # Conv2d(1, C, (D, D)) weight, I=1 squeezed
        "b_conv": rnd((1, C)),
    }
    # First MLP layer input = H0 + C (concat of the two interaction branches).
    dims = [H0 + C] + list(mlp_layers[1:])
    mlp = []
    for i in range(len(dims) - 1):
        mlp.append((rnd((dims[i], dims[i + 1])), rnd((1, dims[i + 1]))))
    params["mlp"] = mlp
    params["w_out"] = rnd((dims[-1], 1))
    params["b_out"] = rnd((1, 1))
    return params


def pnn_reference(user_input, item_input, params):
    """Plain-JAX reference of the module forward (uses the same bf16-stored
    embedding tables as the kernel so the comparison is apples-to-apples)."""
    ue = params["user_emb"].astype(jnp.bfloat16).astype(jnp.float32)
    ie = params["item_emb"].astype(jnp.bfloat16).astype(jnp.float32)
    u = jnp.take(ue, user_input, axis=0)
    v = jnp.take(ie, item_input, axis=0)
    ip = (u * v) @ params["w_ip"] + params["b_ip"]
    outer = u[:, :, None] * v[:, None, :]
    conv = jnp.einsum("bde,cde->bc", outer, params["w_conv"]) + params["b_conv"]
    x = jnp.concatenate([ip, conv], axis=-1)
    for w, b in params["mlp"]:
        x = jnp.maximum(x @ w + b, 0.0)
    y = x @ params["w_out"] + params["b_out"]
    return jax.nn.sigmoid(y)


if __name__ == "__main__":
    num_users, num_items = 100, 200
    embedding_dim = 16
    mlp_layers = [32, 64, 32]
    batch = 8

    key = jax.random.PRNGKey(0)
    pkey, ukey, ikey = jax.random.split(key, 3)
    params = init_params(pkey, num_users, num_items, embedding_dim, mlp_layers)
    user_input = jax.random.randint(ukey, (batch,), 0, num_users, dtype=jnp.int32)
    item_input = jax.random.randint(ikey, (batch,), 0, num_items, dtype=jnp.int32)

    out = pnn_forward(user_input, item_input, params)
    out = jax.block_until_ready(out)

    ref = pnn_reference(user_input, item_input, params)
    np.testing.assert_allclose(np.asarray(out), np.asarray(ref),
                               rtol=2e-3, atol=2e-4)
    print("KERNEL_OK")
</pallas_src>

<mosaic_0001>
module attributes {stable_mosaic.version = 11 : i64} {
  func.func @kernel(%arg0: i32, %arg1: memref<8x1xi32, #tpu.memory_space<vmem>>, %arg2: memref<8x1xi32, #tpu.memory_space<vmem>>, %arg3: memref<100x16xbf16, #tpu.memory_space<vmem>>, %arg4: memref<200x16xbf16, #tpu.memory_space<vmem>>, %arg5: memref<16x256xf32, #tpu.memory_space<vmem>>, %arg6: memref<16x256xf32, #tpu.memory_space<vmem>>, %arg7: memref<256x64xf32, #tpu.memory_space<vmem>>, %arg8: memref<1x64xf32, #tpu.memory_space<vmem>>, %arg9: memref<64x32xf32, #tpu.memory_space<vmem>>, %arg10: memref<1x32xf32, #tpu.memory_space<vmem>>, %arg11: memref<1x32xf32, #tpu.memory_space<vmem>>, %arg12: memref<1x1xf32, #tpu.memory_space<vmem>>, %arg13: memref<1x8xf32, #tpu.memory_space<vmem>>) attributes {dimension_semantics = [#tpu.dimension_semantics<parallel>], iteration_bounds = array<i64: 1>, scalar_prefetch = 0 : i64, scratch_operands = 0 : i64, tpu.core_type = #tpu.core_type<tc>, window_params = [{transform_indices = @transform_0, window_bounds = array<i64: 8, 1>}, {transform_indices = @transform_1, window_bounds = array<i64: 8, 1>}, {pipeline_mode = #tpu.pipeline_mode<synchronous>, transform_indices = @transform_2, window_bounds = array<i64: 100, 16>}, {pipeline_mode = #tpu.pipeline_mode<synchronous>, transform_indices = @transform_3, window_bounds = array<i64: 200, 16>}, {pipeline_mode = #tpu.pipeline_mode<synchronous>, transform_indices = @transform_4, window_bounds = array<i64: 16, 256>}, {pipeline_mode = #tpu.pipeline_mode<synchronous>, transform_indices = @transform_5, window_bounds = array<i64: 16, 256>}, {pipeline_mode = #tpu.pipeline_mode<synchronous>, transform_indices = @transform_6, window_bounds = array<i64: 256, 64>}, {pipeline_mode = #tpu.pipeline_mode<synchronous>, transform_indices = @transform_7, window_bounds = array<i64: 1, 64>}, {pipeline_mode = #tpu.pipeline_mode<synchronous>, transform_indices = @transform_8, window_bounds = array<i64: 64, 32>}, {pipeline_mode = #tpu.pipeline_mode<synchronous>, transform_indices = @transform_9, window_bounds = array<i64: 1, 32>}, {pipeline_mode = #tpu.pipeline_mode<synchronous>, transform_indices = @transform_10, window_bounds = array<i64: 1, 32>}, {pipeline_mode = #tpu.pipeline_mode<synchronous>, transform_indices = @transform_11, window_bounds = array<i64: 1, 1>}, {transform_indices = @transform_12, window_bounds = array<i64: 1, 8>}]} {
    %c0 = arith.constant 0 : index
    %c0_0 = arith.constant 0 : index
    %0 = vector.load %arg1[%c0, %c0_0] : memref<8x1xi32, #tpu.memory_space<vmem>>, vector<8x1xi32>
    %1 = tpu.iota {dimensions = array<i32: 1>} : vector<8x100xi32>
    %2 = vector.broadcast %0 : vector<8x1xi32> to vector<8x100xi32>
    %3 = arith.cmpi eq, %2, %1 : vector<8x100xi32>
    %4 = arith.extui %3 : vector<8x100xi1> to vector<8x100xi32>
    %5 = arith.sitofp %4 : vector<8x100xi32> to vector<8x100xf32>
    %c0_1 = arith.constant 0 : index
    %c0_2 = arith.constant 0 : index
    %6 = vector.load %arg2[%c0_1, %c0_2] : memref<8x1xi32, #tpu.memory_space<vmem>>, vector<8x1xi32>
    %7 = tpu.iota {dimensions = array<i32: 1>} : vector<8x200xi32>
    %8 = vector.broadcast %6 : vector<8x1xi32> to vector<8x200xi32>
    %9 = arith.cmpi eq, %8, %7 : vector<8x200xi32>
    %10 = arith.extui %9 : vector<8x200xi1> to vector<8x200xi32>
    %11 = arith.sitofp %10 : vector<8x200xi32> to vector<8x200xf32>
    %c0_3 = arith.constant 0 : index
    %c0_4 = arith.constant 0 : index
    %12 = vector.load %arg3[%c0_3, %c0_4] : memref<100x16xbf16, #tpu.memory_space<vmem>>, vector<100x16xbf16>
    %13 = arith.extf %12 : vector<100x16xbf16> to vector<100x16xf32>
    %cst = arith.constant dense<0.000000e+00> : vector<8x16xf32>
    %14 = tpu.matmul %5, %13, %cst {dimension_numbers = #tpu.dot_dimension_numbers<[1], [0], [0], [1], [0, 0, 1, 1], [], []>} : vector<8x100xf32>, vector<100x16xf32>, vector<8x16xf32> -> vector<8x16xf32>
    %c0_5 = arith.constant 0 : index
    %c0_6 = arith.constant 0 : index
    %15 = vector.load %arg4[%c0_5, %c0_6] : memref<200x16xbf16, #tpu.memory_space<vmem>>, vector<200x16xbf16>
    %16 = arith.extf %15 : vector<200x16xbf16> to vector<200x16xf32>
    %cst_7 = arith.constant dense<0.000000e+00> : vector<8x16xf32>
    %17 = tpu.matmul %11, %16, %cst_7 {dimension_numbers = #tpu.dot_dimension_numbers<[1], [0], [0], [1], [0, 0, 1, 1], [], []>} : vector<8x200xf32>, vector<200x16xf32>, vector<8x16xf32> -> vector<8x16xf32>
    %c0_8 = arith.constant 0 : index
    %c0_9 = arith.constant 0 : index
    %18 = vector.load %arg5[%c0_8, %c0_9] : memref<16x256xf32, #tpu.memory_space<vmem>>, vector<16x256xf32>
    %cst_10 = arith.constant dense<0.000000e+00> : vector<8x256xf32>
    %19 = tpu.matmul %14, %18, %cst_10 {dimension_numbers = #tpu.dot_dimension_numbers<[1], [0], [0], [1], [0, 0, 1, 1], [], []>} : vector<8x16xf32>, vector<16x256xf32>, vector<8x256xf32> -> vector<8x256xf32>
    %c0_11 = arith.constant 0 : index
    %c0_12 = arith.constant 0 : index
    %20 = vector.load %arg6[%c0_11, %c0_12] : memref<16x256xf32, #tpu.memory_space<vmem>>, vector<16x256xf32>
    %cst_13 = arith.constant dense<0.000000e+00> : vector<8x256xf32>
    %21 = tpu.matmul %17, %20, %cst_13 {dimension_numbers = #tpu.dot_dimension_numbers<[1], [0], [0], [1], [0, 0, 1, 1], [], []>} : vector<8x16xf32>, vector<16x256xf32>, vector<8x256xf32> -> vector<8x256xf32>
    %22 = arith.mulf %19, %21 : vector<8x256xf32>
    %c0_14 = arith.constant 0 : index
    %c0_15 = arith.constant 0 : index
    %23 = vector.load %arg7[%c0_14, %c0_15] : memref<256x64xf32, #tpu.memory_space<vmem>>, vector<256x64xf32>
    %cst_16 = arith.constant dense<0.000000e+00> : vector<8x64xf32>
    %24 = tpu.matmul %22, %23, %cst_16 {dimension_numbers = #tpu.dot_dimension_numbers<[1], [0], [0], [1], [0, 0, 1, 1], [], []>} : vector<8x256xf32>, vector<256x64xf32>, vector<8x64xf32> -> vector<8x64xf32>
    %c0_17 = arith.constant 0 : index
    %c0_18 = arith.constant 0 : index
    %25 = vector.load %arg8[%c0_17, %c0_18] : memref<1x64xf32, #tpu.memory_space<vmem>>, vector<1x64xf32>
    %26 = vector.broadcast %25 : vector<1x64xf32> to vector<8x64xf32>
    %27 = arith.addf %24, %26 : vector<8x64xf32>
    %cst_19 = arith.constant 0.000000e+00 : f32
    %28 = vector.broadcast %cst_19 : f32 to vector<8x64xf32>
    %29 = arith.maximumf %27, %28 : vector<8x64xf32>
    %c0_20 = arith.constant 0 : index
    %c0_21 = arith.constant 0 : index
    %30 = vector.load %arg9[%c0_20, %c0_21] : memref<64x32xf32, #tpu.memory_space<vmem>>, vector<64x32xf32>
    %c0_22 = arith.constant 0 : index
    %c0_23 = arith.constant 0 : index
    %31 = vector.load %arg10[%c0_22, %c0_23] : memref<1x32xf32, #tpu.memory_space<vmem>>, vector<1x32xf32>
    %cst_24 = arith.constant dense<0.000000e+00> : vector<8x32xf32>
    %32 = tpu.matmul %29, %30, %cst_24 {dimension_numbers = #tpu.dot_dimension_numbers<[1], [0], [0], [1], [0, 0, 1, 1], [], []>} : vector<8x64xf32>, vector<64x32xf32>, vector<8x32xf32> -> vector<8x32xf32>
    %33 = vector.broadcast %31 : vector<1x32xf32> to vector<8x32xf32>
    %34 = arith.addf %32, %33 : vector<8x32xf32>
    %cst_25 = arith.constant 0.000000e+00 : f32
    %35 = vector.broadcast %cst_25 : f32 to vector<8x32xf32>
    %36 = arith.maximumf %34, %35 : vector<8x32xf32>
    %c0_26 = arith.constant 0 : index
    %c0_27 = arith.constant 0 : index
    %37 = vector.load %arg11[%c0_26, %c0_27] : memref<1x32xf32, #tpu.memory_space<vmem>>, vector<1x32xf32>
    %cst_28 = arith.constant dense<0.000000e+00> : vector<1x8xf32>
    %38 = tpu.matmul %37, %36, %cst_28 {dimension_numbers = #tpu.dot_dimension_numbers<[1], [1], [0], [0], [0, 0, 1, 0], [], []>} : vector<1x32xf32>, vector<8x32xf32>, vector<1x8xf32> -> vector<1x8xf32>
    %c0_29 = arith.constant 0 : index
    %c0_30 = arith.constant 0 : index
    %39 = vector.load %arg12[%c0_29, %c0_30] : memref<1x1xf32, #tpu.memory_space<vmem>>, vector<1x1xf32>
    %40 = vector.broadcast %39 : vector<1x1xf32> to vector<1x8xf32>
    %41 = arith.addf %38, %40 : vector<1x8xf32>
    %cst_31 = arith.constant 0.000000e+00 : f32
    %42 = vector.broadcast %cst_31 : f32 to vector<1x8xf32>
    %43 = arith.subf %42, %41 : vector<1x8xf32>
    %44 = math.exp %43 : vector<1x8xf32>
    %cst_32 = arith.constant 1.000000e+00 : f32
    %45 = vector.broadcast %cst_32 : f32 to vector<1x8xf32>
    %46 = arith.addf %45, %44 : vector<1x8xf32>
    %47 = tpu.reciprocal %46 : vector<1x8xf32> -> vector<1x8xf32>
    %c0_33 = arith.constant 0 : index
    %c0_34 = arith.constant 0 : index
    %48 = vector.load %arg13[%c0_33, %c0_34] : memref<1x8xf32, #tpu.memory_space<vmem>>, vector<1x8xf32>
    tpu.vector_store %arg13[%c0_33, %c0_34], %47 {strides = array<i32>} : memref<1x8xf32, #tpu.memory_space<vmem>>, vector<1x8xf32>,
    return
  }
  func.func @transform_0(%arg0: i32) -> (i32, i32) {
    %c0_i32 = arith.constant 0 : i32
    %c0_i32_0 = arith.constant 0 : i32
    return %arg0, %c0_i32 : i32, i32
  }
  func.func @transform_1(%arg0: i32) -> (i32, i32) {
    %c0_i32 = arith.constant 0 : i32
    %c0_i32_0 = arith.constant 0 : i32
    return %arg0, %c0_i32 : i32, i32
  }
  func.func @transform_2(%arg0: i32) -> (i32, i32) {
    %c0_i32 = arith.constant 0 : i32
    %c0_i32_0 = arith.constant 0 : i32
    %c0_i32_1 = arith.constant 0 : i32
    return %c0_i32, %c0_i32_0 : i32, i32
  }
  func.func @transform_3(%arg0: i32) -> (i32, i32) {
    %c0_i32 = arith.constant 0 : i32
    %c0_i32_0 = arith.constant 0 : i32
    %c0_i32_1 = arith.constant 0 : i32
    return %c0_i32, %c0_i32_0 : i32, i32
  }
  func.func @transform_4(%arg0: i32) -> (i32, i32) {
    %c0_i32 = arith.constant 0 : i32
    %c0_i32_0 = arith.constant 0 : i32
    %c0_i32_1 = arith.constant 0 : i32
    return %c0_i32, %c0_i32_0 : i32, i32
  }
  func.func @transform_5(%arg0: i32) -> (i32, i32) {
    %c0_i32 = arith.constant 0 : i32
    %c0_i32_0 = arith.constant 0 : i32
    %c0_i32_1 = arith.constant 0 : i32
    return %c0_i32, %c0_i32_0 : i32, i32
  }
  func.func @transform_6(%arg0: i32) -> (i32, i32) {
    %c0_i32 = arith.constant 0 : i32
    %c0_i32_0 = arith.constant 0 : i32
    %c0_i32_1 = arith.constant 0 : i32
    return %c0_i32, %c0_i32_0 : i32, i32
  }
  func.func @transform_7(%arg0: i32) -> (i32, i32) {
    %c0_i32 = arith.constant 0 : i32
    %c0_i32_0 = arith.constant 0 : i32
    %c0_i32_1 = arith.constant 0 : i32
    return %c0_i32, %c0_i32_0 : i32, i32
  }
  func.func @transform_8(%arg0: i32) -> (i32, i32) {
    %c0_i32 = arith.constant 0 : i32
    %c0_i32_0 = arith.constant 0 : i32
    %c0_i32_1 = arith.constant 0 : i32
    return %c0_i32, %c0_i32_0 : i32, i32
  }
  func.func @transform_9(%arg0: i32) -> (i32, i32) {
    %c0_i32 = arith.constant 0 : i32
    %c0_i32_0 = arith.constant 0 : i32
    %c0_i32_1 = arith.constant 0 : i32
    return %c0_i32, %c0_i32_0 : i32, i32
  }
  func.func @transform_10(%arg0: i32) -> (i32, i32) {
    %c0_i32 = arith.constant 0 : i32
    %c0_i32_0 = arith.constant 0 : i32
    %c0_i32_1 = arith.constant 0 : i32
    return %c0_i32, %c0_i32_0 : i32, i32
  }
  func.func @transform_11(%arg0: i32) -> (i32, i32) {
    %c0_i32 = arith.constant 0 : i32
    %c0_i32_0 = arith.constant 0 : i32
    %c0_i32_1 = arith.constant 0 : i32
    return %c0_i32, %c0_i32_0 : i32, i32
  }
  func.func @transform_12(%arg0: i32) -> (i32, i32) {
    %c0_i32 = arith.constant 0 : i32
    %c0_i32_0 = arith.constant 0 : i32
    return %c0_i32, %arg0 : i32, i32
  }
}

</mosaic_0001>

<llo_original>
// kernel: tpu_custom_call.1
$region0: #{tpu_custom_call.1}
  #allocation0 [shape = 'u32[]', space=smem, size = 0x4, offset = 0x4, fixed_abs, tag = 'smem constant byte address 0x4 - core index']
  #allocation1 [shape = 'u32[72,128]{1,0:T(1,128)}', space=vmem, size = 0x9000, scoped, tag = 'internal scratch']
  #allocation2 [shape = 'f32[1,1]{1,0:T(1,128)S(1)}', space=vmem, size = 0x200, scoped, tag = 'scoped memory for tpu_custom_call.1']
  %s0 = inlined_call_operand.vmem [shape: s32[8,1], index: 0, kind: input, shape index: {}]
  %s1 = inlined_call_operand.vmem [shape: s32[8,1], index: 1, kind: input, shape index: {}]
  %s2 = inlined_call_operand.vmem [shape: bf16[100,16], index: 2, kind: input, shape index: {}]
  %s3 = inlined_call_operand.vmem [shape: bf16[200,16], index: 3, kind: input, shape index: {}]
  %s4 = inlined_call_operand.vmem [shape: f32[16,256], index: 4, kind: input, shape index: {}]
  %s5 = inlined_call_operand.vmem [shape: f32[16,256], index: 5, kind: input, shape index: {}]
  %s6 = inlined_call_operand.vmem [shape: f32[256,64], index: 6, kind: input, shape index: {}]
  %s7 = inlined_call_operand.vmem [shape: f32[1,64], index: 7, kind: input, shape index: {}]
  %s8 = inlined_call_operand.vmem [shape: f32[64,32], index: 8, kind: input, shape index: {}]
  %s9 = inlined_call_operand.vmem [shape: f32[1,32], index: 9, kind: input, shape index: {}]
  %s10 = inlined_call_operand.vmem [shape: f32[1,32], index: 10, kind: input, shape index: {}]
  %s11 = inlined_call_operand.<no memory space> [shape: f32[1,1], index: 11, kind: input, shape index: {}]
  %s12 = inlined_call_operand.hbm [shape: f32[1,8], index: 12, kind: output, shape index: {}]
  %s13 = sld [smem:[#allocation0]]
  $region58: #{tpu_custom_call.1} parent=0
    _
  %s15 = ssub.s32 1, %s13
  %s16 = scalar_select 0, %s15, %s13
  %v17 = vstv %s11
  %18 = vst [vmem:[#allocation2] sm:$0x1] %v17
  $region1: #{tpu_custom_call.1} parent=0
    #allocation3 [shape = 'u8[512]{0}', space=vmem, size = 0x400, scoped, tag = 'output window, operand 0, single buffered']
    #allocation4 [shape = 's32[1]{0}', space=sflag, size = 0x4, scoped, tag = 'scoped memory for tpu_custom_call.1']
    %19 = vsyncpa [#allocation4], 0
    // Predicated region
    $region2: #{tpu_custom_call.1} parent=1 // pred_check
      _
    $region3: #{tpu_custom_call.1} parent=1 // pred_check_branch
      %21 = sbr.rel (0) target = $region5
    $region4: #{tpu_custom_call.1} parent=1 // pred_region
      _
    $region5: #{tpu_custom_call.1} parent=1 // pred_fallthru
      _
    // Predicated region
    $region6: #{tpu_custom_call.1} parent=1 // pred_check
      _
    $region7: #{tpu_custom_call.1} parent=1 // pred_check_branch
      %23 = sbr.rel (0) target = $region9
    $region8: #{tpu_custom_call.1} parent=1 // pred_region
      _
    $region9: #{tpu_custom_call.1} parent=1 // pred_fallthru
      _
    // Predicated region
    $region10: #{tpu_custom_call.1} parent=1 // pred_check
      _
    $region11: #{tpu_custom_call.1} parent=1 // pred_check_branch
      %25 = sbr.rel (0) target = $region13
    $region12: #{tpu_custom_call.1} parent=1 // pred_region
      _
    $region13: #{tpu_custom_call.1} parent=1 // pred_fallthru
      _
    // Predicated region
    $region14: #{tpu_custom_call.1} parent=1 // pred_check
      _
    $region15: #{tpu_custom_call.1} parent=1 // pred_check_branch
      %27 = sbr.rel (0) target = $region17
    $region16: #{tpu_custom_call.1} parent=1 // pred_region
      _
    $region17: #{tpu_custom_call.1} parent=1 // pred_fallthru
      _
    // Predicated region
    $region18: #{tpu_custom_call.1} parent=1 // pred_check
      _
    $region19: #{tpu_custom_call.1} parent=1 // pred_check_branch
      %29 = sbr.rel (0) target = $region21
    $region20: #{tpu_custom_call.1} parent=1 // pred_region
      _
    $region21: #{tpu_custom_call.1} parent=1 // pred_fallthru
      _
    // Predicated region
    $region22: #{tpu_custom_call.1} parent=1 // pred_check
      _
    $region23: #{tpu_custom_call.1} parent=1 // pred_check_branch
      %31 = sbr.rel (0) target = $region25
    $region24: #{tpu_custom_call.1} parent=1 // pred_region
      _
    $region25: #{tpu_custom_call.1} parent=1 // pred_fallthru
      _
    // Predicated region
    $region26: #{tpu_custom_call.1} parent=1 // pred_check
      _
    $region27: #{tpu_custom_call.1} parent=1 // pred_check_branch
      %33 = sbr.rel (0) target = $region29
    $region28: #{tpu_custom_call.1} parent=1 // pred_region
      _
    $region29: #{tpu_custom_call.1} parent=1 // pred_fallthru
      _
    // Predicated region
    $region30: #{tpu_custom_call.1} parent=1 // pred_check
      _
    $region31: #{tpu_custom_call.1} parent=1 // pred_check_branch
      %35 = sbr.rel (0) target = $region33
    $region32: #{tpu_custom_call.1} parent=1 // pred_region
      _
    $region33: #{tpu_custom_call.1} parent=1 // pred_fallthru
      _
    // Predicated region
    $region34: #{tpu_custom_call.1} parent=1 // pred_check
      _
    $region35: #{tpu_custom_call.1} parent=1 // pred_check_branch
      %37 = sbr.rel (0) target = $region37
    $region36: #{tpu_custom_call.1} parent=1 // pred_region
      _
    $region37: #{tpu_custom_call.1} parent=1 // pred_fallthru
      _
    // Predicated region
    $region38: #{tpu_custom_call.1} parent=1 // pred_check
      _
    $region39: #{tpu_custom_call.1} parent=1 // pred_check_branch
      %39 = sbr.rel (0) target = $region41
    $region40: #{tpu_custom_call.1} parent=1 // pred_region
      _
    $region41: #{tpu_custom_call.1} parent=1 // pred_fallthru
      _
    // Predicated region
    $region42: #{tpu_custom_call.1} parent=1 // pred_check
      _
    $region43: #{tpu_custom_call.1} parent=1 // pred_check_branch
      %41 = sbr.rel (0) target = $region45
    $region44: #{tpu_custom_call.1} parent=1 // pred_region
      _
    $region45: #{tpu_custom_call.1} parent=1 // pred_fallthru
      _
    // Predicated region
    $region46: #{tpu_custom_call.1} parent=1 // pred_check
      _
    $region47: #{tpu_custom_call.1} parent=1 // pred_check_branch
      %43 = sbr.rel (0) target = $region49
    $region48: #{tpu_custom_call.1} parent=1 // pred_region
      _
    $region49: #{tpu_custom_call.1} parent=1 // pred_fallthru
      _
    %v44 = vld [vmem:[%s0] sm:$0xff]
    %v45 = vlaneseq
    %v46 = vand.u32 %v45, 127
    %47 = vset.pattern.permute.xlu0 0
    %48 = vperm.xlu0 %47, %v44
    %v49 = vpop.permute.xlu0 %48
    %vm50 = vcmp.eq.s32.totalorder %v49, %v46
    %v51 = vsel %vm50, 1, 0
    %v52 = vcvt.s32.f32 %v51
    %v53 = vld [vmem:[%s1] sm:$0xff]
    %v54 = vadd.s32 %v46, 128
    %55 = vset.pattern.permute.xlu0 0
    %56 = vperm.xlu0 %55, %v53
    %v57 = vpop.permute.xlu0 %56
    %vm58 = vcmp.eq.s32.totalorder %v57, %v46
    %vm59 = vcmp.eq.s32.totalorder %v57, %v54
    %v60 = vsel %vm58, 1, 0
    %v61 = vsel %vm59, 1, 0
    %v62 = vcvt.s32.f32 %v60
    %v63 = vcvt.s32.f32 %v61
    %v64 = vld [vmem:[%s2] sm:$0xf]
    %v65 = vld [vmem:[%s2 + $0x4] sm:$0xf]
    %v66 = vld [vmem:[%s2 + $0x8] sm:$0xf]
    %v67 = vld [vmem:[%s2 + $0xc] sm:$0xf]
    %v68 = vld [vmem:[%s2 + $0x10] sm:$0xf]
    %v69 = vld [vmem:[%s2 + $0x14] sm:$0xf]
    %v70 = vld [vmem:[%s2 + $0x18] sm:$0xf]
    %v71 = vld [vmem:[%s2 + $0x1c] sm:$0xf]
    %v72 = vld [vmem:[%s2 + $0x20] sm:$0xf]
    %v73 = vld [vmem:[%s2 + $0x24] sm:$0xf]
    %v74 = vld [vmem:[%s2 + $0x28] sm:$0xf]
    %v75 = vld [vmem:[%s2 + $0x2c] sm:$0xf]
    %v76 = vld [vmem:[%s2 + $0x30] sm:$0x3]
    %v77 = vunpack.c.l.bf16 %v64
    %v78 = vunpack.c.l.bf16 %v65
    %v79 = vunpack.c.l.bf16 %v66
    %v80 = vunpack.c.l.bf16 %v67
    %v81 = vunpack.c.l.bf16 %v68
    %v82 = vunpack.c.l.bf16 %v69
    %v83 = vunpack.c.l.bf16 %v70
    %v84 = vunpack.c.l.bf16 %v71
    %v85 = vunpack.c.l.bf16 %v72
    %v86 = vunpack.c.l.bf16 %v73
    %v87 = vunpack.c.l.bf16 %v74
    %v88 = vunpack.c.l.bf16 %v75
    %v89 = vunpack.c.l.bf16 %v76
    %vm90 = vcmask 818176
    %v92 = vsel %vm90, %v52, 0
    %vm94 = vcmask 1043456
    %v96 = vsel %vm94, %v89, 0
    %98 = vmatpush.msra.mxu0 0.0
    %99 = vmatpush.msra.mxu0 0.0
    %100 = vmatpush.msra.mxu0 0.0
    %101 = vmatpush.msra.mxu0 %v96
    %102 = vmatpush.msra.mxu0 %v88
    %103 = vmatpush.msra.mxu0 %v87
    %104 = vmatpush.msra.mxu0 %v86
    %105 = vmatpush.msra.mxu0 %v85
    %106 = vmatpush.msra.mxu0 %v84
    %107 = vmatpush.msra.mxu0 %v83
    %108 = vmatpush.msra.mxu0 %v82
    %109 = vmatpush.msra.mxu0 %v81
    %110 = vmatpush.msra.mxu0 %v80
    %111 = vmatpush.msra.mxu0 %v79
    %112 = vmatpush.msra.mxu0 %v78
    %113 = vmatpush.msra.mxu0 %v77
    %114 = vmatmul.f32.gmra.mxu0 %v92
    %v115 = vpop.f32.mrf.mxu0
    %v116 = vadd.f32 0.0, %v115
    %117 = vdwg.mxu0
    %v118 = vld [vmem:[%s3] sm:$0xf]
    %v119 = vld [vmem:[%s3 + $0x4] sm:$0xf]
    %v120 = vld [vmem:[%s3 + $0x8] sm:$0xf]
    %v121 = vld [vmem:[%s3 + $0xc] sm:$0xf]
    %v122 = vld [vmem:[%s3 + $0x10] sm:$0xf]
    %v123 = vld [vmem:[%s3 + $0x14] sm:$0xf]
    %v124 = vld [vmem:[%s3 + $0x18] sm:$0xf]
    %v125 = vld [vmem:[%s3 + $0x1c] sm:$0xf]
    %v126 = vld [vmem:[%s3 + $0x20] sm:$0xf]
    %v127 = vld [vmem:[%s3 + $0x24] sm:$0xf]
    %v128 = vld [vmem:[%s3 + $0x28] sm:$0xf]
    %v129 = vld [vmem:[%s3 + $0x2c] sm:$0xf]
    %v130 = vld [vmem:[%s3 + $0x30] sm:$0xf]
    %v131 = vld [vmem:[%s3 + $0x34] sm:$0xf]
    %v132 = vld [vmem:[%s3 + $0x38] sm:$0xf]
    %v133 = vld [vmem:[%s3 + $0x3c] sm:$0xf]
    %v134 = vld [vmem:[%s3 + $0x40] sm:$0xf]
    %v135 = vld [vmem:[%s3 + $0x44] sm:$0xf]
    %v136 = vld [vmem:[%s3 + $0x48] sm:$0xf]
    %v137 = vld [vmem:[%s3 + $0x4c] sm:$0xf]
    %v138 = vld [vmem:[%s3 + $0x50] sm:$0xf]
    %v139 = vld [vmem:[%s3 + $0x54] sm:$0xf]
    %v140 = vld [vmem:[%s3 + $0x58] sm:$0xf]
    %v141 = vld [vmem:[%s3 + $0x5c] sm:$0xf]
    %v142 = vld [vmem:[%s3 + $0x60] sm:$0xf]
    %v143 = vunpack.c.l.bf16 %v118
    %v144 = vunpack.c.l.bf16 %v119
    %v145 = vunpack.c.l.bf16 %v120
    %v146 = vunpack.c.l.bf16 %v121
    %v147 = vunpack.c.l.bf16 %v122
    %v148 = vunpack.c.l.bf16 %v123
    %v149 = vunpack.c.l.bf16 %v124
    %v150 = vunpack.c.l.bf16 %v125
    %v151 = vunpack.c.l.bf16 %v126
    %v152 = vunpack.c.l.bf16 %v127
    %v153 = vunpack.c.l.bf16 %v128
    %v154 = vunpack.c.l.bf16 %v129
    %v155 = vunpack.c.l.bf16 %v130
    %v156 = vunpack.c.l.bf16 %v131
    %v157 = vunpack.c.l.bf16 %v132
    %v158 = vunpack.c.l.bf16 %v133
    %v159 = vunpack.c.l.bf16 %v134
    %v160 = vunpack.c.l.bf16 %v135
    %v161 = vunpack.c.l.bf16 %v136
    %v162 = vunpack.c.l.bf16 %v137
    %v163 = vunpack.c.l.bf16 %v138
    %v164 = vunpack.c.l.bf16 %v139
    %v165 = vunpack.c.l.bf16 %v140
    %v166 = vunpack.c.l.bf16 %v141
    %v167 = vunpack.c.l.bf16 %v142
    %vm168 = vcmask 588800
    %v170 = vsel %vm168, %v63, 0
    %172 = vmatpush.msra.mxu0 %v158
    %173 = vmatpush.msra.mxu0 %v157
    %174 = vmatpush.msra.mxu0 %v156
    %175 = vmatpush.msra.mxu0 %v155
    %176 = vmatpush.msra.mxu0 %v154
    %177 = vmatpush.msra.mxu0 %v153
    %178 = vmatpush.msra.mxu0 %v152
    %179 = vmatpush.msra.mxu0 %v151
    %180 = vmatpush.msra.mxu0 %v150
    %181 = vmatpush.msra.mxu0 %v149
    %182 = vmatpush.msra.mxu0 %v148
    %183 = vmatpush.msra.mxu0 %v147
    %184 = vmatpush.msra.mxu0 %v146
    %185 = vmatpush.msra.mxu0 %v145
    %186 = vmatpush.msra.mxu0 %v144
    %187 = vmatpush.msra.mxu0 %v143
    %188 = vmatmul.f32.gmra.mxu0 %v62
    %v189 = vpop.f32.mrf.mxu0
    %v190 = vadd.f32 0.0, %v189
    %191 = vdwg.mxu0
    %192 = vmatpush.msra.mxu0 0.0
    %193 = vmatpush.msra.mxu0 0.0
    %194 = vmatpush.msra.mxu0 0.0
    %195 = vmatpush.msra.mxu0 0.0
    %196 = vmatpush.msra.mxu0 0.0
    %197 = vmatpush.msra.mxu0 0.0
    %198 = vmatpush.msra.mxu0 0.0
    %199 = vmatpush.msra.mxu0 %v167
    %200 = vmatpush.msra.mxu0 %v166
    %201 = vmatpush.msra.mxu0 %v165
    %202 = vmatpush.msra.mxu0 %v164
    %203 = vmatpush.msra.mxu0 %v163
    %204 = vmatpush.msra.mxu0 %v162
    %205 = vmatpush.msra.mxu0 %v161
    %206 = vmatpush.msra.mxu0 %v160
    %207 = vmatpush.msra.mxu0 %v159
    %208 = vmatmul.f32.gmra.mxu0 %v170
    %v209 = vpop.f32.mrf.mxu0
    %v210 = vadd.f32 %v190, %v209
    %211 = vdwg.mxu0
    %v212 = vld [vmem:[%s4] sm:$0xff]
    %v213 = vld [vmem:[%s4 + $0x8] sm:$0xff]
    %v214 = vld [vmem:[%s4 + $0x10] sm:$0xff]
    %v215 = vld [vmem:[%s4 + $0x18] sm:$0xff]
    %vm216 = vcmask 130048
    %v218 = vsel %vm216, %v116, 0
    %220 = vmatpush.msra.mxu0 0.0
    %221 = vmatpush.msra.mxu0 0.0
    %222 = vmatpush.msra.mxu0 0.0
    %223 = vmatpush.msra.mxu0 0.0
    %224 = vmatpush.msra.mxu0 0.0
    %225 = vmatpush.msra.mxu0 0.0
    %226 = vmatpush.msra.mxu0 0.0
    %227 = vmatpush.msra.mxu0 0.0
    %228 = vmatpush.msra.mxu0 0.0
    %229 = vmatpush.msra.mxu0 0.0
    %230 = vmatpush.msra.mxu0 0.0
    %231 = vmatpush.msra.mxu0 0.0
    %232 = vmatpush.msra.mxu0 0.0
    %233 = vmatpush.msra.mxu0 0.0
    %234 = vmatpush.msra.mxu0 %v214
    %235 = vmatpush.msra.mxu0 %v212
    %236 = vmatmul.f32.gmra.mxu0 %v218
    %v237 = vpop.f32.mrf.mxu0
    %v238 = vadd.f32 0.0, %v237
    %239 = vdwg.mxu0
    %240 = vmatpush.msra.mxu0 0.0
    %241 = vmatpush.msra.mxu0 0.0
    %242 = vmatpush.msra.mxu0 0.0
    %243 = vmatpush.msra.mxu0 0.0
    %244 = vmatpush.msra.mxu0 0.0
    %245 = vmatpush.msra.mxu0 0.0
    %246 = vmatpush.msra.mxu0 0.0
    %247 = vmatpush.msra.mxu0 0.0
    %248 = vmatpush.msra.mxu0 0.0
    %249 = vmatpush.msra.mxu0 0.0
    %250 = vmatpush.msra.mxu0 0.0
    %251 = vmatpush.msra.mxu0 0.0
    %252 = vmatpush.msra.mxu0 0.0
    %253 = vmatpush.msra.mxu0 0.0
    %254 = vmatpush.msra.mxu0 %v215
    %255 = vmatpush.msra.mxu0 %v213
    %256 = vmatmul.f32.gmra.mxu0 %v218
    %v257 = vpop.f32.mrf.mxu0
    %v258 = vadd.f32 0.0, %v257
    %259 = vdwg.mxu0
    %v260 = vld [vmem:[%s5] sm:$0xff]
    %v261 = vld [vmem:[%s5 + $0x8] sm:$0xff]
    %v262 = vld [vmem:[%s5 + $0x10] sm:$0xff]
    %v263 = vld [vmem:[%s5 + $0x18] sm:$0xff]
    %v265 = vsel %vm216, %v210, 0
    %267 = vmatpush.msra.mxu0 0.0
    %268 = vmatpush.msra.mxu0 0.0
    %269 = vmatpush.msra.mxu0 0.0
    %270 = vmatpush.msra.mxu0 0.0
    %271 = vmatpush.msra.mxu0 0.0
    %272 = vmatpush.msra.mxu0 0.0
    %273 = vmatpush.msra.mxu0 0.0
    %274 = vmatpush.msra.mxu0 0.0
    %275 = vmatpush.msra.mxu0 0.0
    %276 = vmatpush.msra.mxu0 0.0
    %277 = vmatpush.msra.mxu0 0.0
    %278 = vmatpush.msra.mxu0 0.0
    %279 = vmatpush.msra.mxu0 0.0
    %280 = vmatpush.msra.mxu0 0.0
    %281 = vmatpush.msra.mxu0 %v262
    %282 = vmatpush.msra.mxu0 %v260
    %283 = vmatmul.f32.gmra.mxu0 %v265
    %v284 = vpop.f32.mrf.mxu0
    %v285 = vadd.f32 0.0, %v284
    %286 = vdwg.mxu0
    %287 = vmatpush.msra.mxu0 0.0
    %288 = vmatpush.msra.mxu0 0.0
    %289 = vmatpush.msra.mxu0 0.0
    %290 = vmatpush.msra.mxu0 0.0
    %291 = vmatpush.msra.mxu0 0.0
    %292 = vmatpush.msra.mxu0 0.0
    %293 = vmatpush.msra.mxu0 0.0
    %294 = vmatpush.msra.mxu0 0.0
    %295 = vmatpush.msra.mxu0 0.0
    %296 = vmatpush.msra.mxu0 0.0
    %297 = vmatpush.msra.mxu0 0.0
    %298 = vmatpush.msra.mxu0 0.0
    %299 = vmatpush.msra.mxu0 0.0
    %300 = vmatpush.msra.mxu0 0.0
    %301 = vmatpush.msra.mxu0 %v263
    %302 = vmatpush.msra.mxu0 %v261
    %303 = vmatmul.f32.gmra.mxu0 %v265
    %v304 = vpop.f32.mrf.mxu0
    %v305 = vadd.f32 0.0, %v304
    %306 = vdwg.mxu0
    %v307 = vmul.f32 %v238, %v285
    %v308 = vmul.f32 %v258, %v305
    %v309 = vld [vmem:[%s6] sm:$0xff]
    %v310 = vld [vmem:[%s6 + $0x8] sm:$0xff]
    %v311 = vld [vmem:[%s6 + $0x10] sm:$0xff]
    %v312 = vld [vmem:[%s6 + $0x18] sm:$0xff]
    %v313 = vld [vmem:[%s6 + $0x20] sm:$0xff]
    %v314 = vld [vmem:[%s6 + $0x28] sm:$0xff]
    %v315 = vld [vmem:[%s6 + $0x30] sm:$0xff]
    %v316 = vld [vmem:[%s6 + $0x38] sm:$0xff]
    %v317 = vld [vmem:[%s6 + $0x40] sm:$0xff]
    %v318 = vld [vmem:[%s6 + $0x48] sm:$0xff]
    %v319 = vld [vmem:[%s6 + $0x50] sm:$0xff]
    %v320 = vld [vmem:[%s6 + $0x58] sm:$0xff]
    %v321 = vld [vmem:[%s6 + $0x60] sm:$0xff]
    %v322 = vld [vmem:[%s6 + $0x68] sm:$0xff]
    %v323 = vld [vmem:[%s6 + $0x70] sm:$0xff]
    %v324 = vld [vmem:[%s6 + $0x78] sm:$0xff]
    %v325 = vld [vmem:[%s6 + $0x80] sm:$0xff]
    %v326 = vld [vmem:[%s6 + $0x88] sm:$0xff]
    %v327 = vld [vmem:[%s6 + $0x90] sm:$0xff]
    %v328 = vld [vmem:[%s6 + $0x98] sm:$0xff]
    %v329 = vld [vmem:[%s6 + $0xa0] sm:$0xff]
    %v330 = vld [vmem:[%s6 + $0xa8] sm:$0xff]
    %v331 = vld [vmem:[%s6 + $0xb0] sm:$0xff]
    %v332 = vld [vmem:[%s6 + $0xb8] sm:$0xff]
    %v333 = vld [vmem:[%s6 + $0xc0] sm:$0xff]
    %v334 = vld [vmem:[%s6 + $0xc8] sm:$0xff]
    %v335 = vld [vmem:[%s6 + $0xd0] sm:$0xff]
    %v336 = vld [vmem:[%s6 + $0xd8] sm:$0xff]
    %v337 = vld [vmem:[%s6 + $0xe0] sm:$0xff]
    %v338 = vld [vmem:[%s6 + $0xe8] sm:$0xff]
    %v339 = vld [vmem:[%s6 + $0xf0] sm:$0xff]
    %v340 = vld [vmem:[%s6 + $0xf8] sm:$0xff]
    %v341 = vld [vmem:[%s7] sm:$0x1]
    %v343 = vperm.slane %v341, 0
    %345 = vmatpush.msra.mxu0 %v324
    %346 = vmatpush.msra.mxu0 %v323
    %347 = vmatpush.msra.mxu0 %v322
    %348 = vmatpush.msra.mxu0 %v321
    %349 = vmatpush.msra.mxu0 %v320
    %350 = vmatpush.msra.mxu0 %v319
    %351 = vmatpush.msra.mxu0 %v318
    %352 = vmatpush.msra.mxu0 %v317
    %353 = vmatpush.msra.mxu0 %v316
    %354 = vmatpush.msra.mxu0 %v315
    %355 = vmatpush.msra.mxu0 %v314
    %356 = vmatpush.msra.mxu0 %v313
    %357 = vmatpush.msra.mxu0 %v312
    %358 = vmatpush.msra.mxu0 %v311
    %359 = vmatpush.msra.mxu0 %v310
    %360 = vmatpush.msra.mxu0 %v309
    %361 = vmatmul.f32.gmra.mxu0 %v307
    %v362 = vpop.f32.mrf.mxu0
    %v363 = vadd.f32 %v343, %v362
    %364 = vdwg.mxu0
    %365 = vmatpush.msra.mxu0 %v340
    %366 = vmatpush.msra.mxu0 %v339
    %367 = vmatpush.msra.mxu0 %v338
    %368 = vmatpush.msra.mxu0 %v337
    %369 = vmatpush.msra.mxu0 %v336
    %370 = vmatpush.msra.mxu0 %v335
    %371 = vmatpush.msra.mxu0 %v334
    %372 = vmatpush.msra.mxu0 %v333
    %373 = vmatpush.msra.mxu0 %v332
    %374 = vmatpush.msra.mxu0 %v331
    %375 = vmatpush.msra.mxu0 %v330
    %376 = vmatpush.msra.mxu0 %v329
    %377 = vmatpush.msra.mxu0 %v328
    %378 = vmatpush.msra.mxu0 %v327
    %379 = vmatpush.msra.mxu0 %v326
    %380 = vmatpush.msra.mxu0 %v325
    %381 = vmatmul.f32.gmra.mxu0 %v308
    %v382 = vpop.f32.mrf.mxu0
    %v383 = vadd.f32 %v363, %v382
    %384 = vdwg.mxu0
    %v385 = vmax.f32 %v383, 0.0
    %v386 = vld [vmem:[%s8] sm:$0xff]
    %v387 = vld [vmem:[%s8 + $0x8] sm:$0xff]
    %v388 = vld [vmem:[%s8 + $0x10] sm:$0xff]
    %v389 = vld [vmem:[%s8 + $0x18] sm:$0xff]
    %v390 = vld [vmem:[%s8 + $0x20] sm:$0xff]
    %v391 = vld [vmem:[%s8 + $0x28] sm:$0xff]
    %v392 = vld [vmem:[%s8 + $0x30] sm:$0xff]
    %v393 = vld [vmem:[%s8 + $0x38] sm:$0xff]
    %v394 = vld [vmem:[%s9] sm:$0x1]
    %v396 = vperm.slane %v394, 0
    %vm398 = vcmask 523264
    %v400 = vsel %vm398, %v385, 0
    %402 = vmatpush.msra.mxu0 0.0
    %403 = vmatpush.msra.mxu0 0.0
    %404 = vmatpush.msra.mxu0 0.0
    %405 = vmatpush.msra.mxu0 0.0
    %406 = vmatpush.msra.mxu0 0.0
    %407 = vmatpush.msra.mxu0 0.0
    %408 = vmatpush.msra.mxu0 0.0
    %409 = vmatpush.msra.mxu0 0.0
    %410 = vmatpush.msra.mxu0 %v393
    %411 = vmatpush.msra.mxu0 %v392
    %412 = vmatpush.msra.mxu0 %v391
    %413 = vmatpush.msra.mxu0 %v390
    %414 = vmatpush.msra.mxu0 %v389
    %415 = vmatpush.msra.mxu0 %v388
    %416 = vmatpush.msra.mxu0 %v387
    %417 = vmatpush.msra.mxu0 %v386
    %418 = vmatmul.f32.gmra.mxu0 %v400
    %v419 = vpop.f32.mrf.mxu0
    %v420 = vadd.f32 %v396, %v419
    %421 = vdwg.mxu0
    %v422 = vmax.f32 %v420, 0.0
    %v423 = vld [vmem:[%s10] sm:$0x1]
    %v424 = vld [vmem:[#allocation2] sm:$0x1]
    %426 = vset.pattern.permute.xlu0 0
    %427 = vperm.xlu0 %426, %v424
    %v428 = vpop.permute.xlu0 %427
    %v430 = vperm.slane %v428, 0
    %vm431 = vcmask 261120
    %v433 = vsel %vm431, %v423, 0
    %v436 = vsel %vm431, %v422, 0
    %438 = vmatpush.xpose.msra.mxu0 0.0
    %439 = vmatpush.xpose.msra.mxu0 0.0
    %440 = vmatpush.xpose.msra.mxu0 0.0
    %441 = vmatpush.xpose.msra.mxu0 0.0
    %442 = vmatpush.xpose.msra.mxu0 0.0
    %443 = vmatpush.xpose.msra.mxu0 0.0
    %444 = vmatpush.xpose.msra.mxu0 0.0
    %445 = vmatpush.xpose.msra.mxu0 0.0
    %446 = vmatpush.xpose.msra.mxu0 0.0
    %447 = vmatpush.xpose.msra.mxu0 0.0
    %448 = vmatpush.xpose.msra.mxu0 0.0
    %449 = vmatpush.xpose.msra.mxu0 0.0
    %450 = vmatpush.xpose.msra.mxu0 0.0
    %451 = vmatpush.xpose.msra.mxu0 0.0
    %452 = vmatpush.xpose.msra.mxu0 0.0
    %453 = vmatpush.xpose.msra.mxu0 %v436
    %454 = vmatmul.f32.gmra.mxu0 %v433
    %v455 = vpop.f32.mrf.mxu0
    %v456 = vadd.f32 %v430, %v455
    %457 = vdwg.mxu0
    %v458 = vsub.f32 0.0, %v456
    %v459 = vmul.f32 %v458, 1.442695
    %v460 = vpow.pop %v459
    %v461 = vadd.f32 %v460, 1.0
    %v462 = vrcp.pop %v461
    %v463 = vmul.f32 %v461, %v462
    %v464 = vsub.f32 1.0, %v463
    %v465 = vmul.f32 %v462, %v464
    %v466 = vadd.f32 %v462, %v465
    %vm467 = vweird.f32 %v461
    %vm468 = vweird.f32 %v462
    %vm469 = vmor %vm467, %vm468
    %v470 = vsel %vm469, %v462, %v466
    %v471 = vand.u32 2147483647, %v461
    %vm472 = vcmp.eq.f32.partialorder %v471, 8.507059e+37
    %v473 = vand.u32 %v461, 2147483648
    %v474 = vor.u32 1.1754944e-38, %v473
    %v475 = vsel %vm472, %v474, %v470
    %vm476 = vcmask 57344
    %477 = vst.msk [vmem:[#allocation3] sm:$0x1] %vm476, %v475
    // Predicated region
    $region50: #{tpu_custom_call.1} parent=1 // pred_check
      _
    $region51: #{tpu_custom_call.1} parent=1 // pred_check_branch
      %479 = sbr.rel (0) target = $region53
    $region52: #{tpu_custom_call.1} parent=1 // pred_region
      %481 = vsyncadd [#allocation4], 0
      %s483 = sshll.u32 [#allocation3], 4
      %s484 = int_to_ptr.vmem [resolvable:$true] %s483
      %s485 = sshll.u32 %s12, 4
      %s486 = int_to_ptr.hbm [resolvable:$true] %s485
      %488 = dma.vmem_to_hbm [thread:$0]  %s484, 16, %s486, [#allocation4]
    $region53: #{tpu_custom_call.1} parent=1 // pred_fallthru
      _
    // Predicated region
    $region54: #{tpu_custom_call.1} parent=1 // pred_check
      _
    $region55: #{tpu_custom_call.1} parent=1 // pred_check_branch
      %490 = sbr.rel (0) target = $region57
    $region56: #{tpu_custom_call.1} parent=1 // pred_region
      %492 = dma.done [#allocation4], 16
    $region57: #{tpu_custom_call.1} parent=1 // pred_fallthru
      _
    %493 = vsyncpa [#allocation4], 1

</llo_original>
